<compile_context>
chip_gen: v7x
topology: tpu7x:2x2x1
jax: 0.10.0
libtpu: 0.0.40
codegen_flags: <defaults>
</compile_context>

<pallas_src>
import functools

import jax
import jax.numpy as jnp
from jax import lax
from jax.experimental import pallas as pl
from jax.experimental.pallas import tpu as pltpu


def _triplet_partial_kernel(a_ref, p_ref, n_ref, out_ref, *, margin, batch, tb,
                            needs_mask):
    a = a_ref[...]
    p = p_ref[...]
    n = n_ref[...]

    # Fused reduction: (a-p)^2 - (a-n)^2 == (n - p) * ((a - p) + (a - n)).
    # Differences in the input dtype; multiply + reduce accumulate in f32.
    d1 = (n - p).astype(jnp.float32)
    d2 = ((a - p) + (a - n)).astype(jnp.float32)
    diff = jnp.sum(d1 * d2, axis=1, keepdims=True)                 # (TB, 1)

    losses = jnp.maximum(diff + jnp.float32(margin), 0.0)          # (TB, 1)

    if needs_mask:
        # Mask rows past the true batch size (ragged final tile reads padding).
        base = pl.program_id(0) * tb
        row_ids = lax.broadcasted_iota(jnp.int32, (tb, 1), 0) + base
        losses = jnp.where(row_ids < batch, losses, 0.0)

    # Per-tile partial sum, written as a full (8, 128) vreg tile so the store
    # is lane-dense and unmasked.
    partial = jnp.sum(losses)                                      # scalar f32
    out_ref[...] = jnp.broadcast_to(partial, out_ref.shape)


def _choose_tile_rows(B, D, itemsize):
    """Rows per tile: 3 inputs x TB x D x itemsize x 2 (dbl buffer) <= ~8 MiB."""
    budget = 8 * 1024 * 1024
    per_row = 3 * D * itemsize * 2
    tb = max(1, budget // per_row)
    tb = min(tb, 1024, B)
    if tb < B:
        # Sublane alignment: 8 rows for 4-byte dtypes, 16 for 2-byte (bf16),
        # 32 for 1-byte (int8/fp8).
        sub = 8 if itemsize >= 4 else (16 if itemsize == 2 else 32)
        tb = max(sub, (tb // sub) * sub)
    return tb


def triplet_loss(anchor, positive, negative, margin, *, block_rows=None):
    """Pallas TPU implementation of TripletLoss.forward."""
    assert anchor.shape == positive.shape == negative.shape
    assert anchor.ndim == 2
    B, D = anchor.shape
    itemsize = jnp.dtype(anchor.dtype).itemsize

    tb = block_rows if block_rows is not None else _choose_tile_rows(B, D, itemsize)
    tb = int(min(tb, B))
    grid = pl.cdiv(B, tb)
    needs_mask = (grid * tb != B)

    # TODO(synk): for D < 128 a lane-dense repack (B, D) -> (B*D/128, 128)
    # would raise lane utilization; skipped here to keep the per-row relu simple.

    kernel = functools.partial(
        _triplet_partial_kernel, margin=float(margin), batch=B, tb=tb,
        needs_mask=needs_mask,
    )

    partials = pl.pallas_call(
        kernel,
        out_shape=jax.ShapeDtypeStruct((grid, 8, 128), jnp.float32),
        grid=(grid,),
        in_specs=[
            pl.BlockSpec((tb, D), lambda i: (i, 0)),
            pl.BlockSpec((tb, D), lambda i: (i, 0)),
            pl.BlockSpec((tb, D), lambda i: (i, 0)),
        ],
        out_specs=pl.BlockSpec((1, 8, 128), lambda i: (i, 0, 0)),
        compiler_params=pltpu.CompilerParams(
            dimension_semantics=("parallel",)
        ),
    )(anchor, positive, negative)

    # Tiny final reduction + mean in plain JAX (keeps the grid axis "parallel"
    # so v7x can split tiles across its two TensorCores).
    return jnp.sum(partials[:, 0, 0]) / jnp.float32(B)


def _reference_triplet_loss(anchor, positive, negative, margin):
    dp = jnp.sum((anchor - positive) ** 2, axis=1)
    dn = jnp.sum((anchor - negative) ** 2, axis=1)
    return jnp.mean(jnp.maximum(dp - dn + margin, 0.0))


if __name__ == "__main__":
    key = jax.random.PRNGKey(0)
    margin = 1.0

    # Small demo shape consistent with the module: batch of 8 embeddings, dim 32.
    k_a, k_p, k_n = jax.random.split(key, 3)
    B, D = 8, 32
    anchor = jax.random.normal(k_a, (B, D), dtype=jnp.float32)
    positive = jax.random.normal(k_p, (B, D), dtype=jnp.float32)
    negative = jax.random.normal(k_n, (B, D), dtype=jnp.float32)

    loss = triplet_loss(anchor, positive, negative, margin)
    loss = jax.block_until_ready(loss)
    ref = _reference_triplet_loss(anchor, positive, negative, margin)
    assert jnp.allclose(loss, ref, rtol=1e-5, atol=1e-5), (loss, ref)

    # Exercise the tiled + ragged-last-tile path (B not divisible by TB).
    k_a2, k_p2, k_n2 = jax.random.split(jax.random.PRNGKey(1), 3)
    B2, D2 = 20, 256
    a2 = jax.random.normal(k_a2, (B2, D2), dtype=jnp.float32)
    p2 = jax.random.normal(k_p2, (B2, D2), dtype=jnp.float32)
    n2 = jax.random.normal(k_n2, (B2, D2), dtype=jnp.float32)
    loss2 = jax.block_until_ready(triplet_loss(a2, p2, n2, margin, block_rows=8))
    ref2 = _reference_triplet_loss(a2, p2, n2, margin)
    assert jnp.allclose(loss2, ref2, rtol=1e-5, atol=1e-5), (loss2, ref2)

    print("KERNEL_OK")
</pallas_src>

<mosaic_0001>
module attributes {stable_mosaic.version = 11 : i64} {
  func.func @_triplet_partial_kernel(%arg0: i32, %arg1: memref<8x32xf32, #tpu.memory_space<vmem>>, %arg2: memref<8x32xf32, #tpu.memory_space<vmem>>, %arg3: memref<8x32xf32, #tpu.memory_space<vmem>>, %arg4: memref<1x8x128xf32, #tpu.memory_space<vmem>>) attributes {dimension_semantics = [#tpu.dimension_semantics<parallel>], iteration_bounds = array<i64: 1>, scalar_prefetch = 0 : i64, scratch_operands = 0 : i64, tpu.core_type = #tpu.core_type<tc>, window_params = [{transform_indices = @transform_0, window_bounds = array<i64: 8, 32>}, {transform_indices = @transform_1, window_bounds = array<i64: 8, 32>}, {transform_indices = @transform_2, window_bounds = array<i64: 8, 32>}, {transform_indices = @transform_3, window_bounds = array<i64: 1, 8, 128>}]} {
    %c0 = arith.constant 0 : index
    %c0_0 = arith.constant 0 : index
    %0 = vector.load %arg1[%c0, %c0_0] : memref<8x32xf32, #tpu.memory_space<vmem>>, vector<8x32xf32>
    %c0_1 = arith.constant 0 : index
    %c0_2 = arith.constant 0 : index
    %1 = vector.load %arg2[%c0_1, %c0_2] : memref<8x32xf32, #tpu.memory_space<vmem>>, vector<8x32xf32>
    %c0_3 = arith.constant 0 : index
    %c0_4 = arith.constant 0 : index
    %2 = vector.load %arg3[%c0_3, %c0_4] : memref<8x32xf32, #tpu.memory_space<vmem>>, vector<8x32xf32>
    %3 = arith.subf %2, %1 : vector<8x32xf32>
    %4 = arith.subf %0, %1 : vector<8x32xf32>
    %5 = arith.subf %0, %2 : vector<8x32xf32>
    %6 = arith.addf %4, %5 : vector<8x32xf32>
    %7 = arith.mulf %3, %6 : vector<8x32xf32>
    %cst = arith.constant dense<0.000000e+00> : vector<8xf32>
    %8 = vector.multi_reduction <add>, %7, %cst [1] : vector<8x32xf32> to vector<8xf32>
    %9 = vector.shape_cast %8 : vector<8xf32> to vector<8x1xf32>
    %cst_5 = arith.constant 1.000000e+00 : f32
    %10 = vector.broadcast %cst_5 : f32 to vector<8x1xf32>
    %11 = arith.addf %9, %10 : vector<8x1xf32>
    %cst_6 = arith.constant 0.000000e+00 : f32
    %12 = vector.broadcast %cst_6 : f32 to vector<8x1xf32>
    %13 = arith.maximumf %11, %12 : vector<8x1xf32>
    %14 = vector.shape_cast %13 : vector<8x1xf32> to vector<1x8x1xf32>
    %cst_7 = arith.constant dense<0.000000e+00> : vector<1xf32>
    %15 = vector.multi_reduction <add>, %14, %cst_7 [1, 2] : vector<1x8x1xf32> to vector<1xf32>
    %16 = vector.shape_cast %15 : vector<1xf32> to vector<1x1x1xf32>
    %17 = vector.extract %16[0, 0, 0] : f32 from vector<1x1x1xf32>
    %18 = vector.broadcast %17 : f32 to vector<1x8x128xf32>
    %c0_8 = arith.constant 0 : index
    %c0_9 = arith.constant 0 : index
    %c0_10 = arith.constant 0 : index
    %19 = vector.load %arg4[%c0_8, %c0_9, %c0_10] : memref<1x8x128xf32, #tpu.memory_space<vmem>>, vector<1x8x128xf32>
    tpu.vector_store %arg4[%c0_8, %c0_9, %c0_10], %18 {strides = array<i32>} : memref<1x8x128xf32, #tpu.memory_space<vmem>>, vector<1x8x128xf32>,
    return
  }
  func.func @transform_0(%arg0: i32) -> (i32, i32) {
    %c0_i32 = arith.constant 0 : i32
    %c0_i32_0 = arith.constant 0 : i32
    return %arg0, %c0_i32 : i32, i32
  }
  func.func @transform_1(%arg0: i32) -> (i32, i32) {
    %c0_i32 = arith.constant 0 : i32
    %c0_i32_0 = arith.constant 0 : i32
    return %arg0, %c0_i32 : i32, i32
  }
  func.func @transform_2(%arg0: i32) -> (i32, i32) {
    %c0_i32 = arith.constant 0 : i32
    %c0_i32_0 = arith.constant 0 : i32
    return %arg0, %c0_i32 : i32, i32
  }
  func.func @transform_3(%arg0: i32) -> (i32, i32, i32) {
    %c0_i32 = arith.constant 0 : i32
    %c0_i32_0 = arith.constant 0 : i32
    %c0_i32_1 = arith.constant 0 : i32
    return %arg0, %c0_i32, %c0_i32_0 : i32, i32, i32
  }
}

</mosaic_0001>

<llo_original>
// kernel: tpu_custom_call.1
$region0: #{tpu_custom_call.1}
  #allocation0 [shape = 'u32[]', space=smem, size = 0x4, offset = 0x4, fixed_abs, tag = 'smem constant byte address 0x4 - core index']
  #allocation1 [shape = 'u32[144,128]{1,0:T(1,128)}', space=vmem, size = 0x12000, scoped, tag = 'internal scratch']
  %s0 = inlined_call_operand.hbm [shape: f32[8,32], index: 0, kind: input, shape index: {}]
  %s1 = inlined_call_operand.hbm [shape: f32[8,32], index: 1, kind: input, shape index: {}]
  %s2 = inlined_call_operand.hbm [shape: f32[8,32], index: 2, kind: input, shape index: {}]
  %s3 = inlined_call_operand.hbm [shape: f32[1,8,128], index: 3, kind: output, shape index: {}]
  %s4 = sld [smem:[#allocation0]]
  $region34: #{tpu_custom_call.1} parent=0
    _
  %s6 = ssub.s32 1, %s4
  %s7 = scalar_select 0, %s6, %s4
  $region1: #{tpu_custom_call.1} parent=0
    #allocation2 [shape = 'u8[4096]{0}', space=vmem, size = 0x1000, scoped, tag = 'input window, operand 0, single buffered']
    #allocation3 [shape = 's32[1]{0}', space=sflag, size = 0x4, scoped, tag = 'scoped memory for tpu_custom_call.1']
    #allocation4 [shape = 's32[1]{0}', space=sflag, size = 0x4, scoped, tag = 'scoped memory for tpu_custom_call.1']
    #allocation5 [shape = 'u8[4096]{0}', space=vmem, size = 0x1000, scoped, tag = 'input window, operand 1, single buffered']
    #allocation6 [shape = 's32[1]{0}', space=sflag, size = 0x4, scoped, tag = 'scoped memory for tpu_custom_call.1']
    #allocation7 [shape = 'u8[4096]{0}', space=vmem, size = 0x1000, scoped, tag = 'input window, operand 2, single buffered']
    #allocation8 [shape = 'u8[4096]{0}', space=vmem, size = 0x1000, scoped, tag = 'output window, operand 0, single buffered']
    %8 = vsyncpa [#allocation3], 0
    %9 = vsyncpa [#allocation6], 0
    %10 = vsyncpa [#allocation4], 0
    // Predicated region
    $region2: #{tpu_custom_call.1} parent=1 // pred_check
      _
    $region3: #{tpu_custom_call.1} parent=1 // pred_check_branch
      %12 = sbr.rel (0) target = $region5
    $region4: #{tpu_custom_call.1} parent=1 // pred_region
      %s14 = ssub.s32 128, 128
      %15 = vsyncadd [#allocation3], %s14
      %s17 = sshll.u32 [#allocation2], 4
      %s18 = int_to_ptr.vmem [resolvable:$true] %s17
      %20 = dma.hbm_to_vmem [thread:$0]  %s0, 128, %s18, [#allocation3]
    $region5: #{tpu_custom_call.1} parent=1 // pred_fallthru
      _
    // Predicated region
    $region6: #{tpu_custom_call.1} parent=1 // pred_check
      _
    $region7: #{tpu_custom_call.1} parent=1 // pred_check_branch
      %22 = sbr.rel (0) target = $region9
    $region8: #{tpu_custom_call.1} parent=1 // pred_region
      %s24 = ssub.s32 128, 128
      %25 = vsyncadd [#allocation6], %s24
      %s27 = sshll.u32 [#allocation5], 4
      %s28 = int_to_ptr.vmem [resolvable:$true] %s27
      %30 = dma.hbm_to_vmem [thread:$0]  %s1, 128, %s28, [#allocation6]
    $region9: #{tpu_custom_call.1} parent=1 // pred_fallthru
      _
    // Predicated region
    $region10: #{tpu_custom_call.1} parent=1 // pred_check
      _
    $region11: #{tpu_custom_call.1} parent=1 // pred_check_branch
      %32 = sbr.rel (0) target = $region13
    $region12: #{tpu_custom_call.1} parent=1 // pred_region
      %s34 = ssub.s32 128, 128
      %35 = vsyncadd [#allocation6], %s34
      %s37 = sshll.u32 [#allocation7], 4
      %s38 = int_to_ptr.vmem [resolvable:$true] %s37
      %40 = dma.hbm_to_vmem [thread:$0]  %s2, 128, %s38, [#allocation6]
    $region13: #{tpu_custom_call.1} parent=1 // pred_fallthru
      _
    // Predicated region
    $region14: #{tpu_custom_call.1} parent=1 // pred_check
      _
    $region15: #{tpu_custom_call.1} parent=1 // pred_check_branch
      %42 = sbr.rel (0) target = $region17
    $region16: #{tpu_custom_call.1} parent=1 // pred_region
      %43 = dma.done [#allocation3], 128
    $region17: #{tpu_custom_call.1} parent=1 // pred_fallthru
      _
    // Predicated region
    $region18: #{tpu_custom_call.1} parent=1 // pred_check
      _
    $region19: #{tpu_custom_call.1} parent=1 // pred_check_branch
      %45 = sbr.rel (0) target = $region21
    $region20: #{tpu_custom_call.1} parent=1 // pred_region
      %46 = dma.done [#allocation6], 128
    $region21: #{tpu_custom_call.1} parent=1 // pred_fallthru
      _
    // Predicated region
    $region22: #{tpu_custom_call.1} parent=1 // pred_check
      _
    $region23: #{tpu_custom_call.1} parent=1 // pred_check_branch
      %48 = sbr.rel (0) target = $region25
    $region24: #{tpu_custom_call.1} parent=1 // pred_region
      %49 = dma.done [#allocation6], 128
    $region25: #{tpu_custom_call.1} parent=1 // pred_fallthru
      _
    %v50 = vld [vmem:[#allocation2] sm:$0xff]
    %v51 = vld [vmem:[#allocation5] sm:$0xff]
    %v52 = vld [vmem:[#allocation7] sm:$0xff]
    %v53 = vsub.f32 %v52, %v51
    %v54 = vsub.f32 %v50, %v51
    %v55 = vsub.f32 %v50, %v52
    %v56 = vadd.f32 %v54, %v55
    %v57 = vmul.f32 %v53, %v56
    %vm58 = vcmask 261120
    %v59 = vsel %vm58, %v57, 0.0
    %60 = vadd.xlane.f32.xlu0 %v59
    %v61 = vpop.xlane.xlu0 %60
    %v62 = vadd.f32 %v61, 1.0
    %v63 = vmax.f32 %v62, 0.0
    %vm64 = vcmask 7168
    %v65 = vsel %vm64, %v63, 0.0
    %66 = vadd.xlane.f32.xlu0 %v65
    %v67 = vpop.xlane.xlu0 %66
    %v68 = vrot.slane %v67, 4
    %v69 = vadd.f32 %v67, %v68
    %v70 = vrot.slane %v69, 2
    %v71 = vadd.f32 %v69, %v70
    %v72 = vrot.slane %v71, 1
    %v73 = vadd.f32 %v71, %v72
    %s74 = vtos %v73
    %v75 = vstv %s74
    %76 = vst [vmem:[#allocation8] sm:$0xff] %v75
    // Predicated region
    $region26: #{tpu_custom_call.1} parent=1 // pred_check
      _
    $region27: #{tpu_custom_call.1} parent=1 // pred_check_branch
      %78 = sbr.rel (0) target = $region29
    $region28: #{tpu_custom_call.1} parent=1 // pred_region
      %s80 = ssub.s32 128, 128
      %81 = vsyncadd [#allocation4], %s80
      %s83 = sshll.u32 [#allocation8], 4
      %s84 = int_to_ptr.vmem [resolvable:$true] %s83
      %86 = dma.vmem_to_hbm [thread:$0]  %s84, 128, %s3, [#allocation4]
    $region29: #{tpu_custom_call.1} parent=1 // pred_fallthru
      _
    // Predicated region
    $region30: #{tpu_custom_call.1} parent=1 // pred_check
      _
    $region31: #{tpu_custom_call.1} parent=1 // pred_check_branch
      %88 = sbr.rel (0) target = $region33
    $region32: #{tpu_custom_call.1} parent=1 // pred_region
      %89 = dma.done [#allocation4], 128
    $region33: #{tpu_custom_call.1} parent=1 // pred_fallthru
      _
    %90 = vsyncpa [#allocation3], 1
    %91 = vsyncpa [#allocation6], 1
    %92 = vsyncpa [#allocation4], 1

</llo_original>
